<compile_context>
chip_gen: v7x
topology: tpu7x:2x2x1
jax: 0.10.0
libtpu: 0.0.40
codegen_flags: <defaults>
</compile_context>

<pallas_src>
import jax
import jax.numpy as jnp
from jax.experimental import pallas as pl
from jax.experimental.pallas import tpu as pltpu

_EPS = 1e-5


def _normal_att_kernel(p_ref, w3_ref, b1_ref, w1_ref, t2_ref, m_ref, o_ref):
    """Fused forward for one row-block (rows = nb*H*W pixels).

    p_ref : (rows, 9*Cin)  im2col patches                          (mxu dtype)
    w3_ref: (9*Cin, Cin)   dense 3x3 weights, BN1 scale folded in  (mxu dtype)
    b1_ref: (1, Cin)       conv bias + BN1 shift                   (f32)
    w1_ref: (Cin, Cout)    dense 1x1 weights, BN2 scale folded in  (mxu dtype)
    t2_ref: (1, Cout)      BN2 shift                               (f32)
    m_ref : (rows, 1)      nearest-interpolated 24x24 mask per pixel (f32)
    o_ref : (rows, Cout)   output
    """
    # conv3x3 (+bias, BN1 folded) + ReLU : one MXU matmul, f32 accumulate.
    y = jnp.dot(p_ref[...], w3_ref[...], preferred_element_type=jnp.float32)
    y = jnp.maximum(y + b1_ref[...], 0.0)

    # conv1x1 (BN2 folded) : one MXU matmul.
    z = jnp.dot(y.astype(w1_ref.dtype), w1_ref[...],
                preferred_element_type=jnp.float32)
    z = z + t2_ref[...]

    # ELU(z) + 1 (alpha = 1); clamp the exp arg so the untaken branch stays finite.
    z = jnp.where(z > 0.0, z + 1.0, jnp.exp(jnp.minimum(z, 0.0)))

    # Precomputed per-pixel mask, broadcast over the Cout lanes.
    o_ref[...] = (z * m_ref[...]).astype(o_ref.dtype)


def _pick_batch_block(N, HW, rows_target=256):
    """Smallest divisor nb of N with nb*HW >= rows_target (fills MXU rows while
    keeping >= 2 parallel grid blocks for v7x's two TensorCores when N >= 2)."""
    for nb in range(1, N + 1):
        if N % nb == 0 and nb * HW >= rows_target:
            return nb
    return N


def fold_params(params, x_shape, *, mxu_dtype=jnp.bfloat16):
    """One-time prep (hoisted out of the per-call path): fold inference-mode BN
    into dense conv weights/biases and precompute the per-pixel mask column."""
    N, Cin, H, W = x_shape
    Cout = params['w1'].shape[0]
    nb = _pick_batch_block(N, H * W)

    s1 = params['g1'] / jnp.sqrt(params['v1'] + _EPS)              # (Cin,)
    b1 = s1 * (params['b3'] - params['m1']) + params['be1']        # (Cin,)
    s2 = params['g2'] / jnp.sqrt(params['v2'] + _EPS)              # (Cout,)
    t2 = params['be2'] - params['m2'] * s2                         # (Cout,)

    # conv_extract (O,I,3,3) -> tap-major dense (9*Cin, Cin), BN1 scale folded in.
    w3f = jnp.transpose(params['w3'], (2, 3, 1, 0)).reshape(9 * Cin, Cin) * s1[None, :]
    # conv2 (O,I,1,1) -> dense (Cin, Cout), BN2 scale folded in.
    w1f = jnp.transpose(params['w1'][:, :, 0, 0], (1, 0)) * s2[None, :]

    # F.interpolate(24x24 border mask, (H,W), 'nearest') as a per-pixel column,
    # tiled over the nb batch elements packed into one row-block.
    ih = (jnp.arange(H) * 24) // H
    iw = (jnp.arange(W) * 24) // W
    keep = ((ih >= 2) & (ih <= 21))[:, None] & ((iw >= 2) & (iw <= 21))[None, :]
    mask_rows = jnp.tile(keep.astype(jnp.float32).reshape(H * W, 1), (nb, 1))

    return {
        'w3f': w3f.astype(mxu_dtype),
        'w1f': w1f.astype(mxu_dtype),
        'b1': b1.reshape(1, Cin).astype(jnp.float32),
        't2': t2.reshape(1, Cout).astype(jnp.float32),
        'mask': mask_rows,
        'nb': nb,
        'G': N // nb,
        'Cout': Cout,
        'mxu_dtype': mxu_dtype,
    }


def normal_att_fwd(x_nchw, folded, *, out_dtype=jnp.float32):
    """Forward with pre-folded params. x_nchw: (N, Cin, H, W) -> (N, Cout, H, W)."""
    N, Cin, H, W = x_nchw.shape
    Cout, nb, G = folded['Cout'], folded['nb'], folded['G']
    mxu_dtype = folded['mxu_dtype']
    rows = nb * H * W

    # im2col in the MXU dtype (bf16-first halves the 9x-expanded HBM stream).
    x = jnp.transpose(x_nchw, (0, 2, 3, 1)).astype(mxu_dtype)          # NHWC
    xp = jnp.pad(x, ((0, 0), (1, 1), (1, 1), (0, 0)))                  # (N,H+2,W+2,Cin)
    taps = [xp[:, dy:dy + H, dx:dx + W, :] for dy in range(3) for dx in range(3)]
    patches = jnp.stack(taps, axis=3).reshape(G, rows, 9 * Cin)        # (G, rows, 9*Cin)

    # NOTE: the constant-index weight/bias operands total <1.5 KB with dense
    # weights, so their default double-buffering is negligible (no need for
    # single-buffering until channel counts grow).
    out_ld = pl.pallas_call(
        _normal_att_kernel,
        out_shape=jax.ShapeDtypeStruct((G, rows, Cout), out_dtype),
        grid=(G,),
        in_specs=[
            pl.BlockSpec((pl.Squeezed(), rows, 9 * Cin), lambda g: (g, 0, 0)),
            pl.BlockSpec((9 * Cin, Cin), lambda g: (0, 0)),
            pl.BlockSpec((1, Cin), lambda g: (0, 0)),
            pl.BlockSpec((Cin, Cout), lambda g: (0, 0)),
            pl.BlockSpec((1, Cout), lambda g: (0, 0)),
            pl.BlockSpec((rows, 1), lambda g: (0, 0)),
        ],
        out_specs=pl.BlockSpec((pl.Squeezed(), rows, Cout), lambda g: (g, 0, 0)),
        compiler_params=pltpu.CompilerParams(dimension_semantics=("parallel",)),
    )(patches, folded['w3f'], folded['b1'], folded['w1f'], folded['t2'], folded['mask'])

    # (G, rows, Cout) -> (N, H, W, Cout) -> (N, Cout, H, W)
    return jnp.transpose(out_ld.reshape(N, H, W, Cout), (0, 3, 1, 2))


def normal_att_mod(x_nchw, params, *, mxu_dtype=jnp.bfloat16, out_dtype=jnp.float32):
    """Full forward (convenience wrapper). In real use, call fold_params once per
    parameter set and reuse it across forwards."""
    if params['w1'].shape[0] == 0:                 # num_attentions == 0 branch
        return jnp.ones((x_nchw.shape[0], 1, 1, 1), x_nchw.dtype)
    folded = fold_params(params, x_nchw.shape, mxu_dtype=mxu_dtype)
    return normal_att_fwd(x_nchw, folded, out_dtype=out_dtype)


def _nearest_mask(H, W):
    """F.interpolate(mask, (H, W), mode='nearest') for the fixed 24x24 mask."""
    base = jnp.zeros((24, 24), jnp.float32).at[2:-2, 2:-2].set(1.0)
    ih = (jnp.arange(H) * 24) // H
    iw = (jnp.arange(W) * 24) // W
    return base[ih][:, iw]


def _ref_forward(x_nchw, params):
    """Pure-JAX reference (same inference-mode BN semantics) for validation."""
    y = jax.lax.conv_general_dilated(
        x_nchw, params['w3'], (1, 1), ((1, 1), (1, 1)),
        dimension_numbers=('NCHW', 'OIHW', 'NCHW'))
    y = y + params['b3'][None, :, None, None]
    y = (y - params['m1'][None, :, None, None]) / jnp.sqrt(params['v1'] + _EPS)[None, :, None, None]
    y = y * params['g1'][None, :, None, None] + params['be1'][None, :, None, None]
    y = jnp.maximum(y, 0.0)
    z = jax.lax.conv_general_dilated(
        y, params['w1'], (1, 1), ((0, 0), (0, 0)),
        dimension_numbers=('NCHW', 'OIHW', 'NCHW'))
    z = (z - params['m2'][None, :, None, None]) / jnp.sqrt(params['v2'] + _EPS)[None, :, None, None]
    z = z * params['g2'][None, :, None, None] + params['be2'][None, :, None, None]
    z = jnp.where(z > 0.0, z, jnp.exp(z) - 1.0) + 1.0
    mask = _nearest_mask(x_nchw.shape[2], x_nchw.shape[3])
    return z * mask[None, None, :, :]


def make_params(key, in_channels, out_channels):
    ks = jax.random.split(key, 11)
    return {
        'w3': 0.1 * jax.random.normal(ks[0], (in_channels, in_channels, 3, 3), jnp.float32),
        'b3': 0.1 * jax.random.normal(ks[1], (in_channels,), jnp.float32),
        'g1': 1.0 + 0.1 * jax.random.normal(ks[2], (in_channels,), jnp.float32),
        'be1': 0.1 * jax.random.normal(ks[3], (in_channels,), jnp.float32),
        'm1': 0.1 * jax.random.normal(ks[4], (in_channels,), jnp.float32),
        'v1': 0.5 + jnp.abs(jax.random.normal(ks[5], (in_channels,), jnp.float32)),
        'w1': 0.1 * jax.random.normal(ks[6], (out_channels, in_channels, 1, 1), jnp.float32),
        'g2': 1.0 + 0.1 * jax.random.normal(ks[7], (out_channels,), jnp.float32),
        'be2': 0.1 * jax.random.normal(ks[8], (out_channels,), jnp.float32),
        'm2': 0.1 * jax.random.normal(ks[9], (out_channels,), jnp.float32),
        'v2': 0.5 + jnp.abs(jax.random.normal(ks[10], (out_channels,), jnp.float32)) * 0.3,
    }


if __name__ == "__main__":
    in_channels, out_channels = 4, 8
    N, H, W = 2, 16, 16

    key = jax.random.PRNGKey(0)
    kx, kp = jax.random.split(key)
    x = jax.random.normal(kx, (N, in_channels, H, W), jnp.float32)
    params = make_params(kp, in_channels, out_channels)

    ref = jax.block_until_ready(_ref_forward(x, params))

    # Exact-precision path (f32 MXU operands) must match the reference tightly.
    out_f32 = jax.block_until_ready(normal_att_mod(x, params, mxu_dtype=jnp.float32))
    assert out_f32.shape == (N, out_channels, H, W)
    assert jnp.allclose(out_f32, ref, atol=1e-4, rtol=1e-4), \
        float(jnp.max(jnp.abs(out_f32 - ref)))

    # Default fast path (bf16 MXU operands, f32 accumulate + f32 elementwise).
    out = jax.block_until_ready(normal_att_mod(x, params))
    assert out.shape == (N, out_channels, H, W)
    assert jnp.allclose(out, ref, atol=3e-2, rtol=3e-2), \
        float(jnp.max(jnp.abs(out - ref)))

    print("KERNEL_OK")
</pallas_src>

<mosaic_0001>
module attributes {stable_mosaic.version = 11 : i64} {
  func.func @_normal_att_kernel(%arg0: i32, %arg1: memref<1x256x36xf32, #tpu.memory_space<vmem>>, %arg2: memref<36x4xf32, #tpu.memory_space<vmem>>, %arg3: memref<1x4xf32, #tpu.memory_space<vmem>>, %arg4: memref<4x8xf32, #tpu.memory_space<vmem>>, %arg5: memref<1x8xf32, #tpu.memory_space<vmem>>, %arg6: memref<256x1xf32, #tpu.memory_space<vmem>>, %arg7: memref<1x256x8xf32, #tpu.memory_space<vmem>>) attributes {dimension_semantics = [#tpu.dimension_semantics<parallel>], iteration_bounds = array<i64: 2>, scalar_prefetch = 0 : i64, scratch_operands = 0 : i64, tpu.core_type = #tpu.core_type<tc>, window_params = [{transform_indices = @transform_0, window_bounds = array<i64: 1, 256, 36>}, {pipeline_mode = #tpu.pipeline_mode<synchronous>, transform_indices = @transform_1, window_bounds = array<i64: 36, 4>}, {pipeline_mode = #tpu.pipeline_mode<synchronous>, transform_indices = @transform_2, window_bounds = array<i64: 1, 4>}, {pipeline_mode = #tpu.pipeline_mode<synchronous>, transform_indices = @transform_3, window_bounds = array<i64: 4, 8>}, {pipeline_mode = #tpu.pipeline_mode<synchronous>, transform_indices = @transform_4, window_bounds = array<i64: 1, 8>}, {pipeline_mode = #tpu.pipeline_mode<synchronous>, transform_indices = @transform_5, window_bounds = array<i64: 256, 1>}, {transform_indices = @transform_6, window_bounds = array<i64: 1, 256, 8>}]} {
    %c0 = arith.constant 0 : index
    %c0_0 = arith.constant 0 : index
    %c0_1 = arith.constant 0 : index
    %0 = vector.load %arg1[%c0, %c0_0, %c0_1] : memref<1x256x36xf32, #tpu.memory_space<vmem>>, vector<1x256x36xf32>
    %1 = vector.shape_cast %0 : vector<1x256x36xf32> to vector<256x36xf32>
    %c0_2 = arith.constant 0 : index
    %c0_3 = arith.constant 0 : index
    %2 = vector.load %arg2[%c0_2, %c0_3] : memref<36x4xf32, #tpu.memory_space<vmem>>, vector<36x4xf32>
    %cst = arith.constant dense<0.000000e+00> : vector<256x4xf32>
    %3 = tpu.matmul %1, %2, %cst {dimension_numbers = #tpu.dot_dimension_numbers<[1], [0], [0], [1], [0, 0, 1, 1], [], []>} : vector<256x36xf32>, vector<36x4xf32>, vector<256x4xf32> -> vector<256x4xf32>
    %c0_4 = arith.constant 0 : index
    %c0_5 = arith.constant 0 : index
    %4 = vector.load %arg3[%c0_4, %c0_5] : memref<1x4xf32, #tpu.memory_space<vmem>>, vector<1x4xf32>
    %5 = vector.broadcast %4 : vector<1x4xf32> to vector<256x4xf32>
    %6 = arith.addf %3, %5 : vector<256x4xf32>
    %cst_6 = arith.constant 0.000000e+00 : f32
    %7 = vector.broadcast %cst_6 : f32 to vector<256x4xf32>
    %8 = arith.maximumf %6, %7 : vector<256x4xf32>
    %c0_7 = arith.constant 0 : index
    %c0_8 = arith.constant 0 : index
    %9 = vector.load %arg4[%c0_7, %c0_8] : memref<4x8xf32, #tpu.memory_space<vmem>>, vector<4x8xf32>
    %cst_9 = arith.constant dense<0.000000e+00> : vector<256x8xf32>
    %10 = tpu.matmul %8, %9, %cst_9 {dimension_numbers = #tpu.dot_dimension_numbers<[1], [0], [0], [1], [0, 0, 1, 1], [], []>} : vector<256x4xf32>, vector<4x8xf32>, vector<256x8xf32> -> vector<256x8xf32>
    %c0_10 = arith.constant 0 : index
    %c0_11 = arith.constant 0 : index
    %11 = vector.load %arg5[%c0_10, %c0_11] : memref<1x8xf32, #tpu.memory_space<vmem>>, vector<1x8xf32>
    %12 = vector.broadcast %11 : vector<1x8xf32> to vector<256x8xf32>
    %13 = arith.addf %10, %12 : vector<256x8xf32>
    %cst_12 = arith.constant 0.000000e+00 : f32
    %14 = vector.broadcast %cst_12 : f32 to vector<256x8xf32>
    %15 = arith.cmpf ogt, %13, %14 : vector<256x8xf32>
    %cst_13 = arith.constant 1.000000e+00 : f32
    %16 = vector.broadcast %cst_13 : f32 to vector<256x8xf32>
    %17 = arith.addf %13, %16 : vector<256x8xf32>
    %cst_14 = arith.constant 0.000000e+00 : f32
    %18 = vector.broadcast %cst_14 : f32 to vector<256x8xf32>
    %19 = arith.minimumf %13, %18 : vector<256x8xf32>
    %20 = math.exp %19 : vector<256x8xf32>
    %21 = arith.select %15, %17, %20 : vector<256x8xi1>, vector<256x8xf32>
    %c0_15 = arith.constant 0 : index
    %c0_16 = arith.constant 0 : index
    %22 = vector.load %arg6[%c0_15, %c0_16] : memref<256x1xf32, #tpu.memory_space<vmem>>, vector<256x1xf32>
    %23 = vector.broadcast %22 : vector<256x1xf32> to vector<256x8xf32>
    %24 = arith.mulf %21, %23 : vector<256x8xf32>
    %c0_17 = arith.constant 0 : index
    %c0_18 = arith.constant 0 : index
    %c0_19 = arith.constant 0 : index
    %25 = vector.load %arg7[%c0_17, %c0_18, %c0_19] : memref<1x256x8xf32, #tpu.memory_space<vmem>>, vector<1x256x8xf32>
    %26 = vector.shape_cast %25 : vector<1x256x8xf32> to vector<256x8xf32>
    %27 = vector.shape_cast %24 : vector<256x8xf32> to vector<1x256x8xf32>
    tpu.vector_store %arg7[%c0_17, %c0_18, %c0_19], %27 {strides = array<i32>} : memref<1x256x8xf32, #tpu.memory_space<vmem>>, vector<1x256x8xf32>,
    return
  }
  func.func @transform_0(%arg0: i32) -> (i32, i32, i32) {
    %c0_i32 = arith.constant 0 : i32
    %c0_i32_0 = arith.constant 0 : i32
    %c0_i32_1 = arith.constant 0 : i32
    return %arg0, %c0_i32, %c0_i32_0 : i32, i32, i32
  }
  func.func @transform_1(%arg0: i32) -> (i32, i32) {
    %c0_i32 = arith.constant 0 : i32
    %c0_i32_0 = arith.constant 0 : i32
    %c0_i32_1 = arith.constant 0 : i32
    return %c0_i32, %c0_i32_0 : i32, i32
  }
  func.func @transform_2(%arg0: i32) -> (i32, i32) {
    %c0_i32 = arith.constant 0 : i32
    %c0_i32_0 = arith.constant 0 : i32
    %c0_i32_1 = arith.constant 0 : i32
    return %c0_i32, %c0_i32_0 : i32, i32
  }
  func.func @transform_3(%arg0: i32) -> (i32, i32) {
    %c0_i32 = arith.constant 0 : i32
    %c0_i32_0 = arith.constant 0 : i32
    %c0_i32_1 = arith.constant 0 : i32
    return %c0_i32, %c0_i32_0 : i32, i32
  }
  func.func @transform_4(%arg0: i32) -> (i32, i32) {
    %c0_i32 = arith.constant 0 : i32
    %c0_i32_0 = arith.constant 0 : i32
    %c0_i32_1 = arith.constant 0 : i32
    return %c0_i32, %c0_i32_0 : i32, i32
  }
  func.func @transform_5(%arg0: i32) -> (i32, i32) {
    %c0_i32 = arith.constant 0 : i32
    %c0_i32_0 = arith.constant 0 : i32
    %c0_i32_1 = arith.constant 0 : i32
    return %c0_i32, %c0_i32_0 : i32, i32
  }
  func.func @transform_6(%arg0: i32) -> (i32, i32, i32) {
    %c0_i32 = arith.constant 0 : i32
    %c0_i32_0 = arith.constant 0 : i32
    %c0_i32_1 = arith.constant 0 : i32
    return %arg0, %c0_i32, %c0_i32_0 : i32, i32, i32
  }
}

</mosaic_0001>

<llo_original>
// kernel: tpu_custom_call.1
$region0: #{tpu_custom_call.1}
  #allocation0 [shape = 'u32[]', space=smem, size = 0x4, offset = 0x4, fixed_abs, tag = 'smem constant byte address 0x4 - core index']
  #allocation1 [shape = 'u32[144,128]{1,0:T(1,128)}', space=vmem, size = 0x12000, scoped, tag = 'internal scratch']
  %s0 = inlined_call_operand.vmem [shape: f32[2,256,36], index: 0, kind: input, shape index: {}]
  %s1 = inlined_call_operand.vmem [shape: f32[36,4], index: 1, kind: input, shape index: {}]
  %s2 = inlined_call_operand.vmem [shape: f32[1,4], index: 2, kind: input, shape index: {}]
  %s3 = inlined_call_operand.vmem [shape: f32[4,8], index: 3, kind: input, shape index: {}]
  %s4 = inlined_call_operand.vmem [shape: f32[1,8], index: 4, kind: input, shape index: {}]
  %s5 = inlined_call_operand.vmem [shape: f32[256,1], index: 5, kind: input, shape index: {}]
  %s6 = inlined_call_operand.vmem [shape: f32[2,256,8], index: 6, kind: output, shape index: {}]
  %s7 = sld [smem:[#allocation0]]
  $region57: #{tpu_custom_call.1} parent=0
    _
  %s9 = ssub.s32 1, %s7
  %s10 = scalar_select 0, %s9, %s7
  loop: start=0, step=1, limit=4
  $region2: #{tpu_custom_call.1} parent=0 // loop_pre_header
    _
  $region3: #{tpu_custom_call.1} parent=0 // loop_header
    %s12 = sphi 0, %s16
    %p13 = scmp.ge.s32.totalorder %s12, 4
    %s22 = sphi 0, %s24
    %s25 = sphi 0, %s22
    %s26 = sphi 0, %s25
    %s42 = sphi 0, %s26
    %s46 = sphi 0, %s46
    %s48 = sphi 0, %s46
    %s49 = sphi 0, %s48
    %s63 = sphi 0, %s49
    %s67 = sphi 0, %s67
    %s69 = sphi 0, %s67
    %s70 = sphi 0, %s69
    %s84 = sphi 0, %s70
    %s88 = sphi 0, %s88
    %s90 = sphi 0, %s88
    %s91 = sphi 0, %s90
    %s105 = sphi 0, %s91
    %s109 = sphi 0, %s109
    %s111 = sphi 0, %s109
    %s112 = sphi 0, %s111
    %s126 = sphi 0, %s112
    %s130 = sphi 0, %s130
    %s132 = sphi 0, %s130
    %s133 = sphi 0, %s132
    %s147 = sphi 0, %s133
    %s153 = sphi 0, %s155
    %s156 = sphi 0, %s153
    %s157 = sphi 0, %s156
    %s173 = sphi 0, %s157
  $region4: #{tpu_custom_call.1} parent=0 // loop_header_branch
    %15 = sbr.rel (%p13) target = $region8
  $region5: #{tpu_custom_call.1} parent=0 // loop_body
    %s17 = ssub.s32 %s12, 1
    %s18 = ssub.s32 %s12, 2
    %s19 = sadd.s32 %s12, 1
    %s20 = ssub.s32 %s12, %s19
    %p21 = scmp.eq.s32.totalorder %s20, 0
    %s23 = sadd.s32 %s22, 1
    %s24 = scalar_select %p21, %s22, %s23
    %p27 = pneg %p21
    %p28 = scmp.eq.s32.totalorder %s12, 1
    %p29 = por %p27, %p28
    %p30 = scmp.ne.s32.totalorder %s22, %s25
    %p31 = scmp.eq.s32.totalorder %s12, 0
    %p32 = por %p30, %p31
    %p33 = scmp.ne.s32.totalorder %s22, %s25
    %p34 = scmp.eq.s32.totalorder %s17, 1
    %p35 = por %p33, %p34
    %p36 = scmp.ne.s32.totalorder %s25, %s26
    %p37 = scmp.eq.s32.totalorder %s17, 0
    %p38 = por %p36, %p37
    %p39 = scmp.ne.s32.totalorder %s25, %s26
    %p40 = scmp.eq.s32.totalorder %s18, 1
    %p41 = por %p39, %p40
    %p43 = scmp.ne.s32.totalorder %s26, %s42
    %p44 = scmp.eq.s32.totalorder %s18, 0
    %p45 = por %p43, %p44
    %s47 = sadd.s32 %s46, 1
    %p50 = scmp.eq.s32.totalorder %s12, 1
    %p51 = scmp.ne.s32.totalorder %s46, %s48
    %p52 = scmp.eq.s32.totalorder %s12, 0
    %p53 = por %p51, %p52
    %p54 = scmp.ne.s32.totalorder %s46, %s48
    %p55 = scmp.eq.s32.totalorder %s17, 1
    %p56 = por %p54, %p55
    %p57 = scmp.ne.s32.totalorder %s48, %s49
    %p58 = scmp.eq.s32.totalorder %s17, 0
    %p59 = por %p57, %p58
    %p60 = scmp.ne.s32.totalorder %s48, %s49
    %p61 = scmp.eq.s32.totalorder %s18, 1
    %p62 = por %p60, %p61
    %p64 = scmp.ne.s32.totalorder %s49, %s63
    %p65 = scmp.eq.s32.totalorder %s18, 0
    %p66 = por %p64, %p65
    %s68 = sadd.s32 %s67, 1
    %p71 = scmp.eq.s32.totalorder %s12, 1
    %p72 = scmp.ne.s32.totalorder %s67, %s69
    %p73 = scmp.eq.s32.totalorder %s12, 0
    %p74 = por %p72, %p73
    %p75 = scmp.ne.s32.totalorder %s67, %s69
    %p76 = scmp.eq.s32.totalorder %s17, 1
    %p77 = por %p75, %p76
    %p78 = scmp.ne.s32.totalorder %s69, %s70
    %p79 = scmp.eq.s32.totalorder %s17, 0
    %p80 = por %p78, %p79
    %p81 = scmp.ne.s32.totalorder %s69, %s70
    %p82 = scmp.eq.s32.totalorder %s18, 1
    %p83 = por %p81, %p82
    %p85 = scmp.ne.s32.totalorder %s70, %s84
    %p86 = scmp.eq.s32.totalorder %s18, 0
    %p87 = por %p85, %p86
    %s89 = sadd.s32 %s88, 1
    %p92 = scmp.eq.s32.totalorder %s12, 1
    %p93 = scmp.ne.s32.totalorder %s88, %s90
    %p94 = scmp.eq.s32.totalorder %s12, 0
    %p95 = por %p93, %p94
    %p96 = scmp.ne.s32.totalorder %s88, %s90
    %p97 = scmp.eq.s32.totalorder %s17, 1
    %p98 = por %p96, %p97
    %p99 = scmp.ne.s32.totalorder %s90, %s91
    %p100 = scmp.eq.s32.totalorder %s17, 0
    %p101 = por %p99, %p100
    %p102 = scmp.ne.s32.totalorder %s90, %s91
    %p103 = scmp.eq.s32.totalorder %s18, 1
    %p104 = por %p102, %p103
    %p106 = scmp.ne.s32.totalorder %s91, %s105
    %p107 = scmp.eq.s32.totalorder %s18, 0
    %p108 = por %p106, %p107
    %s110 = sadd.s32 %s109, 1
    %p113 = scmp.eq.s32.totalorder %s12, 1
    %p114 = scmp.ne.s32.totalorder %s109, %s111
    %p115 = scmp.eq.s32.totalorder %s12, 0
    %p116 = por %p114, %p115
    %p117 = scmp.ne.s32.totalorder %s109, %s111
    %p118 = scmp.eq.s32.totalorder %s17, 1
    %p119 = por %p117, %p118
    %p120 = scmp.ne.s32.totalorder %s111, %s112
    %p121 = scmp.eq.s32.totalorder %s17, 0
    %p122 = por %p120, %p121
    %p123 = scmp.ne.s32.totalorder %s111, %s112
    %p124 = scmp.eq.s32.totalorder %s18, 1
    %p125 = por %p123, %p124
    %p127 = scmp.ne.s32.totalorder %s112, %s126
    %p128 = scmp.eq.s32.totalorder %s18, 0
    %p129 = por %p127, %p128
    %s131 = sadd.s32 %s130, 1
    %p134 = scmp.eq.s32.totalorder %s12, 1
    %p135 = scmp.ne.s32.totalorder %s130, %s132
    %p136 = scmp.eq.s32.totalorder %s12, 0
    %p137 = por %p135, %p136
    %p138 = scmp.ne.s32.totalorder %s130, %s132
    %p139 = scmp.eq.s32.totalorder %s17, 1
    %p140 = por %p138, %p139
    %p141 = scmp.ne.s32.totalorder %s132, %s133
    %p142 = scmp.eq.s32.totalorder %s17, 0
    %p143 = por %p141, %p142
    %p144 = scmp.ne.s32.totalorder %s132, %s133
    %p145 = scmp.eq.s32.totalorder %s18, 1
    %p146 = por %p144, %p145
    %p148 = scmp.ne.s32.totalorder %s133, %s147
    %p149 = scmp.eq.s32.totalorder %s18, 0
    %p150 = por %p148, %p149
    %s151 = ssub.s32 %s12, %s19
    %p152 = scmp.eq.s32.totalorder %s151, 0
    %s154 = sadd.s32 %s153, 1
    %s155 = scalar_select %p152, %s153, %s154
    %p158 = pneg %p152
    %p159 = scmp.eq.s32.totalorder %s12, 1
    %p160 = por %p158, %p159
    %p161 = scmp.ne.s32.totalorder %s153, %s156
    %p162 = scmp.eq.s32.totalorder %s12, 0
    %p163 = por %p161, %p162
    %p164 = scmp.ne.s32.totalorder %s153, %s156
    %p165 = scmp.eq.s32.totalorder %s17, 1
    %p166 = por %p164, %p165
    %p167 = scmp.ne.s32.totalorder %s156, %s157
    %p168 = scmp.eq.s32.totalorder %s17, 0
    %p169 = por %p167, %p168
    %p170 = scmp.ne.s32.totalorder %s156, %s157
    %p171 = scmp.eq.s32.totalorder %s18, 1
    %p172 = por %p170, %p171
    %p174 = scmp.ne.s32.totalorder %s157, %s173
    %p175 = scmp.eq.s32.totalorder %s18, 0
    %p176 = por %p174, %p175
    %p177 = scmp.le.s32.totalorder 1, %s12
    %p178 = scmp.lt.s32.totalorder %s12, 3
    %p179 = pnand %p177, %p178
    %p180 = pneg %p179
    // Predicated region
    $region9: #{tpu_custom_call.1} parent=5 // pred_check
      _
    $region10: #{tpu_custom_call.1} parent=5 // pred_check_branch
      %182 = sbr.rel (%p179) target = $region12
    $region11: #{tpu_custom_call.1} parent=5 // pred_region
      %s183 = ssub.s32 %s12, 1
      // Predicated region
      $region13: #{tpu_custom_call.1} parent=11 // pred_check
        %p184 = pneg %p59
      $region14: #{tpu_custom_call.1} parent=11 // pred_check_branch
        %186 = sbr.rel (%p184) target = $region16
      $region15: #{tpu_custom_call.1} parent=11 // pred_region
        _
      $region16: #{tpu_custom_call.1} parent=11 // pred_fallthru
        _
      // Predicated region
      $region17: #{tpu_custom_call.1} parent=11 // pred_check
        %p187 = pneg %p80
      $region18: #{tpu_custom_call.1} parent=11 // pred_check_branch
        %189 = sbr.rel (%p187) target = $region20
      $region19: #{tpu_custom_call.1} parent=11 // pred_region
        _
      $region20: #{tpu_custom_call.1} parent=11 // pred_fallthru
        _
      // Predicated region
      $region21: #{tpu_custom_call.1} parent=11 // pred_check
        %p190 = pneg %p101
      $region22: #{tpu_custom_call.1} parent=11 // pred_check_branch
        %192 = sbr.rel (%p190) target = $region24
      $region23: #{tpu_custom_call.1} parent=11 // pred_region
        _
      $region24: #{tpu_custom_call.1} parent=11 // pred_fallthru
        _
      // Predicated region
      $region25: #{tpu_custom_call.1} parent=11 // pred_check
        %p193 = pneg %p122
      $region26: #{tpu_custom_call.1} parent=11 // pred_check_branch
        %195 = sbr.rel (%p193) target = $region28
      $region27: #{tpu_custom_call.1} parent=11 // pred_region
        _
      $region28: #{tpu_custom_call.1} parent=11 // pred_fallthru
        _
      // Predicated region
      $region29: #{tpu_custom_call.1} parent=11 // pred_check
        %p196 = pneg %p143
      $region30: #{tpu_custom_call.1} parent=11 // pred_check_branch
        %198 = sbr.rel (%p196) target = $region32
      $region31: #{tpu_custom_call.1} parent=11 // pred_region
        _
      $region32: #{tpu_custom_call.1} parent=11 // pred_fallthru
        _
    $region12: #{tpu_custom_call.1} parent=5 // pred_fallthru
      _
    %p199 = scmp.lt.s32.totalorder %s12, 2
    // Predicated region
    $region33: #{tpu_custom_call.1} parent=5 // pred_check
      %p200 = pneg %p199
    $region34: #{tpu_custom_call.1} parent=5 // pred_check_branch
      %202 = sbr.rel (%p200) target = $region36
    $region35: #{tpu_custom_call.1} parent=5 // pred_region
      // Predicated region
      $region37: #{tpu_custom_call.1} parent=35 // pred_check
        %p203 = pneg %p32
      $region38: #{tpu_custom_call.1} parent=35 // pred_check_branch
        %205 = sbr.rel (%p203) target = $region40
      $region39: #{tpu_custom_call.1} parent=35 // pred_region
        %p206 = scmp.lt.s32.totalorder %s12, 1
        %s207 = scalar_select %p206, %s12, 1
        %s208 = smul.addr %s207, 32
        %s209 = smul.addr %s208, 8
        %s210 = scalar_lea.vmem %s0, %s209
      $region40: #{tpu_custom_call.1} parent=35 // pred_fallthru
        _
    $region36: #{tpu_custom_call.1} parent=5 // pred_fallthru
      _
    %p211 = scmp.le.s32.totalorder 1, %s12
    %p212 = scmp.lt.s32.totalorder %s12, 3
    %p213 = pnand %p211, %p212
    %p214 = pneg %p213
    // Predicated region
    $region41: #{tpu_custom_call.1} parent=5 // pred_check
      _
    $region42: #{tpu_custom_call.1} parent=5 // pred_check_branch
      %216 = sbr.rel (%p213) target = $region44
    $region43: #{tpu_custom_call.1} parent=5 // pred_region
      %s217 = ssub.s32 %s12, 1
      %p218 = scmp.lt.s32.totalorder %s17, 1
      %s219 = scalar_select %p218, %s17, 1
      %s220 = smul.addr %s219, 32
      %s221 = smul.addr %s220, 8
      %s222 = scalar_lea.vmem %s0, %s221
      %p223 = pneg %p38
      %p224 = pneg %p35
      %p225 = pneg %p59
      %p226 = pneg %p56
      %p227 = pneg %p80
      %p228 = pneg %p77
      %p229 = pneg %p101
      %p230 = pneg %p98
      %p231 = pneg %p122
      %p232 = pneg %p119
      %p233 = pneg %p143
      %p234 = pneg %p140
      %p235 = pneg %p169
      %p236 = pneg %p166
      %p237 = scmp.lt.s32.totalorder %s17, 1
      %s238 = scalar_select %p237, %s17, 1
      %s239 = smul.addr %s238, 32
      %s240 = smul.addr %s239, 8
      %s241 = scalar_lea.vmem %s6, %s240
      %p242 = scmp.lt.s32.totalorder %s17, 1
      %s243 = scalar_select %p242, %s17, 1
      %s244 = smul.addr %s243, 32
      %s245 = smul.addr %s244, 8
      %s246 = scalar_lea.vmem %s0, %s245
      %p247 = scmp.lt.s32.totalorder %s17, 1
      %s248 = scalar_select %p247, %s17, 1
      %s249 = smul.addr %s248, 32
      %s250 = smul.addr %s249, 8
      %s251 = scalar_lea.vmem %s6, %s250
      %v252 = vld [vmem:[%s246] sm:$0xff]
      %v253 = vld [vmem:[%s246 + $0x8] sm:$0xff]
      %v254 = vld [vmem:[%s246 + $0x10] sm:$0xff]
      %v255 = vld [vmem:[%s246 + $0x18] sm:$0xff]
      %v256 = vld [vmem:[%s246 + $0x20] sm:$0xff]
      %v257 = vld [vmem:[%s246 + $0x28] sm:$0xff]
      %v258 = vld [vmem:[%s246 + $0x30] sm:$0xff]
      %v259 = vld [vmem:[%s246 + $0x38] sm:$0xff]
      %v260 = vld [vmem:[%s246 + $0x40] sm:$0xff]
      %v261 = vld [vmem:[%s246 + $0x48] sm:$0xff]
      %v262 = vld [vmem:[%s246 + $0x50] sm:$0xff]
      %v263 = vld [vmem:[%s246 + $0x58] sm:$0xff]
      %v264 = vld [vmem:[%s246 + $0x60] sm:$0xff]
      %v265 = vld [vmem:[%s246 + $0x68] sm:$0xff]
      %v266 = vld [vmem:[%s246 + $0x70] sm:$0xff]
      %v267 = vld [vmem:[%s246 + $0x78] sm:$0xff]
      %v268 = vld [vmem:[%s246 + $0x80] sm:$0xff]
      %v269 = vld [vmem:[%s246 + $0x88] sm:$0xff]
      %v270 = vld [vmem:[%s246 + $0x90] sm:$0xff]
      %v271 = vld [vmem:[%s246 + $0x98] sm:$0xff]
      %v272 = vld [vmem:[%s246 + $0xa0] sm:$0xff]
      %v273 = vld [vmem:[%s246 + $0xa8] sm:$0xff]
      %v274 = vld [vmem:[%s246 + $0xb0] sm:$0xff]
      %v275 = vld [vmem:[%s246 + $0xb8] sm:$0xff]
      %v276 = vld [vmem:[%s246 + $0xc0] sm:$0xff]
      %v277 = vld [vmem:[%s246 + $0xc8] sm:$0xff]
      %v278 = vld [vmem:[%s246 + $0xd0] sm:$0xff]
      %v279 = vld [vmem:[%s246 + $0xd8] sm:$0xff]
      %v280 = vld [vmem:[%s246 + $0xe0] sm:$0xff]
      %v281 = vld [vmem:[%s246 + $0xe8] sm:$0xff]
      %v282 = vld [vmem:[%s246 + $0xf0] sm:$0xff]
      %v283 = vld [vmem:[%s246 + $0xf8] sm:$0xff]
      %v284 = vld [vmem:[%s1] sm:$0xff]
      %v285 = vld [vmem:[%s1 + $0x8] sm:$0xff]
      %v286 = vld [vmem:[%s1 + $0x10] sm:$0xff]
      %v287 = vld [vmem:[%s1 + $0x18] sm:$0xff]
      %v288 = vld [vmem:[%s1 + $0x20] sm:$0xf]
      %v289 = vld [vmem:[%s2] sm:$0x1]
      %v291 = vlaneseq
      %v292 = vshrl.u32 %v291, 7
      %v293 = vsub.s32 0, %v292
      %v294 = vrot.slane %v289, %v293
      %vm296 = vcmask 293888
      %v298 = vsel %vm296, %v252, 0
      %v301 = vsel %vm296, %v253, 0
      %v304 = vsel %vm296, %v254, 0
      %v307 = vsel %vm296, %v255, 0
      %v310 = vsel %vm296, %v256, 0
      %v313 = vsel %vm296, %v257, 0
      %v316 = vsel %vm296, %v258, 0
      %v319 = vsel %vm296, %v259, 0
      %v322 = vsel %vm296, %v260, 0
      %v325 = vsel %vm296, %v261, 0
      %v328 = vsel %vm296, %v262, 0
      %v331 = vsel %vm296, %v263, 0
      %v334 = vsel %vm296, %v264, 0
      %v337 = vsel %vm296, %v265, 0
      %v340 = vsel %vm296, %v266, 0
      %v343 = vsel %vm296, %v267, 0
      %v346 = vsel %vm296, %v268, 0
      %v349 = vsel %vm296, %v269, 0
      %v352 = vsel %vm296, %v270, 0
      %v355 = vsel %vm296, %v271, 0
      %v358 = vsel %vm296, %v272, 0
      %v361 = vsel %vm296, %v273, 0
      %v364 = vsel %vm296, %v274, 0
      %v367 = vsel %vm296, %v275, 0
      %v370 = vsel %vm296, %v276, 0
      %v373 = vsel %vm296, %v277, 0
      %v376 = vsel %vm296, %v278, 0
      %v379 = vsel %vm296, %v279, 0
      %v382 = vsel %vm296, %v280, 0
      %v385 = vsel %vm296, %v281, 0
      %v388 = vsel %vm296, %v282, 0
      %v391 = vsel %vm296, %v283, 0
      %vm393 = vcmask 1043456
      %v395 = vsel %vm393, %v288, 0
      %397 = vmatprep.subr.mxu0 0.0
      %398 = vmatpush1.msra.mxu0 %v284
      %399 = vmatprep.subr.mxu0 0.0
      %400 = vmatpush1.msra.mxu0 %v285
      %401 = vmatprep.subr.mxu0 0.0
      %402 = vmatpush1.msra.mxu0 %v286
      %403 = vmatprep.subr.mxu0 0.0
      %404 = vmatpush1.msra.mxu0 %v287
      %405 = vmatprep.subr.mxu0 0.0
      %406 = vmatpush1.msra.mxu0 %v395
      %407 = vmatprep.subr.mxu0 0.0
      %408 = vmatpush1.msra.mxu0 0.0
      %409 = vmatprep.subr.mxu0 0.0
      %410 = vmatpush1.msra.mxu0 0.0
      %411 = vmatprep.subr.mxu0 0.0
      %412 = vmatpush1.msra.mxu0 0.0
      %413 = vmatprep.subr.mxu0 0.0
      %414 = vmatpush1.msra.mxu0 0.0
      %415 = vmatprep.subr.mxu0 0.0
      %416 = vmatpush1.msra.mxu0 0.0
      %417 = vmatprep.subr.mxu0 0.0
      %418 = vmatpush1.msra.mxu0 0.0
      %419 = vmatprep.subr.mxu0 0.0
      %420 = vmatpush1.msra.mxu0 0.0
      %421 = vmatprep.subr.mxu0 0.0
      %422 = vmatpush1.msra.mxu0 0.0
      %423 = vmatprep.subr.mxu0 0.0
      %424 = vmatpush1.msra.mxu0 0.0
      %425 = vmatprep.subr.mxu0 0.0
      %426 = vmatpush1.msra.mxu0 0.0
      %427 = vmatprep.subr.mxu0 0.0
      %428 = vmatpush1.msra.mxu0 0.0
      %429 = vmatprep.subr.mxu0 0.0
      %430 = vmatpush1.msra.mxu0 0.0
      %431 = vmatprep.subr.mxu0 0.0
      %432 = vmatpush1.msra.mxu0 0.0
      %433 = vmatprep.subr.mxu0 0.0
      %434 = vmatpush1.msra.mxu0 0.0
      %435 = vmatprep.subr.mxu0 0.0
      %436 = vmatpush1.msra.mxu0 0.0
      %437 = vmatprep.subr.mxu0 0.0
      %438 = vmatpush1.msra.mxu0 0.0
      %439 = vmatprep.subr.mxu0 0.0
      %440 = vmatpush1.msra.mxu0 0.0
      %441 = vmatprep.subr.mxu0 0.0
      %442 = vmatpush1.msra.mxu0 0.0
      %443 = vmatprep.subr.mxu0 0.0
      %444 = vmatpush1.msra.mxu0 0.0
      %445 = vmatprep.subr.mxu0 0.0
      %446 = vmatpush1.msra.mxu0 0.0
      %447 = vmatprep.subr.mxu0 0.0
      %448 = vmatpush1.msra.mxu0 0.0
      %449 = vmatprep.subr.mxu0 0.0
      %450 = vmatpush1.msra.mxu0 0.0
      %451 = vmatprep.subr.mxu0 0.0
      %452 = vmatpush1.msra.mxu0 0.0
      %453 = vmatprep.subr.mxu0 0.0
      %454 = vmatpush1.msra.mxu0 0.0
      %455 = vmatprep.subr.mxu0 0.0
      %456 = vmatpush1.msra.mxu0 0.0
      %457 = vmatprep.subr.mxu0 0.0
      %458 = vmatpush1.msra.mxu0 0.0
      %459 = vmatprep.subr.mxu0 0.0
      %460 = vmatpush1.msra.mxu0 0.0
      %461 = vmatprep.mubr.f32.mxu0 0.0
      %462 = vmatmul.mubr.f32.gmra.mrb[0].mxu0 %v298
      %v463 = vpop.f32.mrb[0].mxu0
      %v464 = vadd.f32 %v294, %v463
      %v465 = vpop.f32.mrb[0].mxu0
      %466 = vmatprep.mubr.f32.mxu0 0.0
      %467 = vmatmul.mubr.f32.gmra.mrb[0].mxu0 %v301
      %v468 = vpop.f32.mrb[0].mxu0
      %v469 = vadd.f32 %v294, %v468
      %v470 = vpop.f32.mrb[0].mxu0
      %471 = vmatprep.mubr.f32.mxu0 0.0
      %472 = vmatmul.mubr.f32.gmra.mrb[0].mxu0 %v304
      %v473 = vpop.f32.mrb[0].mxu0
      %v474 = vadd.f32 %v294, %v473
      %v475 = vpop.f32.mrb[0].mxu0
      %476 = vmatprep.mubr.f32.mxu0 0.0
      %477 = vmatmul.mubr.f32.gmra.mrb[0].mxu0 %v307
      %v478 = vpop.f32.mrb[0].mxu0
      %v479 = vadd.f32 %v294, %v478
      %v480 = vpop.f32.mrb[0].mxu0
      %481 = vmatprep.mubr.f32.mxu0 0.0
      %482 = vmatmul.mubr.f32.gmra.mrb[0].mxu0 %v310
      %v483 = vpop.f32.mrb[0].mxu0
      %v484 = vadd.f32 %v294, %v483
      %v485 = vpop.f32.mrb[0].mxu0
      %486 = vmatprep.mubr.f32.mxu0 0.0
      %487 = vmatmul.mubr.f32.gmra.mrb[0].mxu0 %v313
      %v488 = vpop.f32.mrb[0].mxu0
      %v489 = vadd.f32 %v294, %v488
      %v490 = vpop.f32.mrb[0].mxu0
      %491 = vmatprep.mubr.f32.mxu0 0.0
      %492 = vmatmul.mubr.f32.gmra.mrb[0].mxu0 %v316
      %v493 = vpop.f32.mrb[0].mxu0
      %v494 = vadd.f32 %v294, %v493
      %v495 = vpop.f32.mrb[0].mxu0
      %496 = vmatprep.mubr.f32.mxu0 0.0
      %497 = vmatmul.mubr.f32.gmra.mrb[0].mxu0 %v319
      %v498 = vpop.f32.mrb[0].mxu0
      %v499 = vadd.f32 %v294, %v498
      %v500 = vpop.f32.mrb[0].mxu0
      %501 = vmatprep.mubr.f32.mxu0 0.0
      %502 = vmatmul.mubr.f32.gmra.mrb[0].mxu0 %v322
      %v503 = vpop.f32.mrb[0].mxu0
      %v504 = vadd.f32 %v294, %v503
      %v505 = vpop.f32.mrb[0].mxu0
      %506 = vmatprep.mubr.f32.mxu0 0.0
      %507 = vmatmul.mubr.f32.gmra.mrb[0].mxu0 %v325
      %v508 = vpop.f32.mrb[0].mxu0
      %v509 = vadd.f32 %v294, %v508
      %v510 = vpop.f32.mrb[0].mxu0
      %511 = vmatprep.mubr.f32.mxu0 0.0
      %512 = vmatmul.mubr.f32.gmra.mrb[0].mxu0 %v328
      %v513 = vpop.f32.mrb[0].mxu0
      %v514 = vadd.f32 %v294, %v513
      %v515 = vpop.f32.mrb[0].mxu0
      %516 = vmatprep.mubr.f32.mxu0 0.0
      %517 = vmatmul.mubr.f32.gmra.mrb[0].mxu0 %v331
      %v518 = vpop.f32.mrb[0].mxu0
      %v519 = vadd.f32 %v294, %v518
      %v520 = vpop.f32.mrb[0].mxu0
      %521 = vmatprep.mubr.f32.mxu0 0.0
      %522 = vmatmul.mubr.f32.gmra.mrb[0].mxu0 %v334
      %v523 = vpop.f32.mrb[0].mxu0
      %v524 = vadd.f32 %v294, %v523
      %v525 = vpop.f32.mrb[0].mxu0
      %526 = vmatprep.mubr.f32.mxu0 0.0
      %527 = vmatmul.mubr.f32.gmra.mrb[0].mxu0 %v337
      %v528 = vpop.f32.mrb[0].mxu0
      %v529 = vadd.f32 %v294, %v528
      %v530 = vpop.f32.mrb[0].mxu0
      %531 = vmatprep.mubr.f32.mxu0 0.0
      %532 = vmatmul.mubr.f32.gmra.mrb[0].mxu0 %v340
      %v533 = vpop.f32.mrb[0].mxu0
      %v534 = vadd.f32 %v294, %v533
      %v535 = vpop.f32.mrb[0].mxu0
      %536 = vmatprep.mubr.f32.mxu0 0.0
      %537 = vmatmul.mubr.f32.gmra.mrb[0].mxu0 %v343
      %v538 = vpop.f32.mrb[0].mxu0
      %v539 = vadd.f32 %v294, %v538
      %v540 = vpop.f32.mrb[0].mxu0
      %541 = vmatprep.mubr.f32.mxu0 0.0
      %542 = vmatmul.mubr.f32.gmra.mrb[0].mxu0 %v346
      %v543 = vpop.f32.mrb[0].mxu0
      %v544 = vadd.f32 %v294, %v543
      %v545 = vpop.f32.mrb[0].mxu0
      %546 = vmatprep.mubr.f32.mxu0 0.0
      %547 = vmatmul.mubr.f32.gmra.mrb[0].mxu0 %v349
      %v548 = vpop.f32.mrb[0].mxu0
      %v549 = vadd.f32 %v294, %v548
      %v550 = vpop.f32.mrb[0].mxu0
      %551 = vmatprep.mubr.f32.mxu0 0.0
      %552 = vmatmul.mubr.f32.gmra.mrb[0].mxu0 %v352
      %v553 = vpop.f32.mrb[0].mxu0
      %v554 = vadd.f32 %v294, %v553
      %v555 = vpop.f32.mrb[0].mxu0
      %556 = vmatprep.mubr.f32.mxu0 0.0
      %557 = vmatmul.mubr.f32.gmra.mrb[0].mxu0 %v355
      %v558 = vpop.f32.mrb[0].mxu0
      %v559 = vadd.f32 %v294, %v558
      %v560 = vpop.f32.mrb[0].mxu0
      %561 = vmatprep.mubr.f32.mxu0 0.0
      %562 = vmatmul.mubr.f32.gmra.mrb[0].mxu0 %v358
      %v563 = vpop.f32.mrb[0].mxu0
      %v564 = vadd.f32 %v294, %v563
      %v565 = vpop.f32.mrb[0].mxu0
      %566 = vmatprep.mubr.f32.mxu0 0.0
      %567 = vmatmul.mubr.f32.gmra.mrb[0].mxu0 %v361
      %v568 = vpop.f32.mrb[0].mxu0
      %v569 = vadd.f32 %v294, %v568
      %v570 = vpop.f32.mrb[0].mxu0
      %571 = vmatprep.mubr.f32.mxu0 0.0
      %572 = vmatmul.mubr.f32.gmra.mrb[0].mxu0 %v364
      %v573 = vpop.f32.mrb[0].mxu0
      %v574 = vadd.f32 %v294, %v573
      %v575 = vpop.f32.mrb[0].mxu0
      %576 = vmatprep.mubr.f32.mxu0 0.0
      %577 = vmatmul.mubr.f32.gmra.mrb[0].mxu0 %v367
      %v578 = vpop.f32.mrb[0].mxu0
      %v579 = vadd.f32 %v294, %v578
      %v580 = vpop.f32.mrb[0].mxu0
      %581 = vmatprep.mubr.f32.mxu0 0.0
      %582 = vmatmul.mubr.f32.gmra.mrb[0].mxu0 %v370
      %v583 = vpop.f32.mrb[0].mxu0
      %v584 = vadd.f32 %v294, %v583
      %v585 = vpop.f32.mrb[0].mxu0
      %586 = vmatprep.mubr.f32.mxu0 0.0
      %587 = vmatmul.mubr.f32.gmra.mrb[0].mxu0 %v373
      %v588 = vpop.f32.mrb[0].mxu0
      %v589 = vadd.f32 %v294, %v588
      %v590 = vpop.f32.mrb[0].mxu0
      %591 = vmatprep.mubr.f32.mxu0 0.0
      %592 = vmatmul.mubr.f32.gmra.mrb[0].mxu0 %v376
      %v593 = vpop.f32.mrb[0].mxu0
      %v594 = vadd.f32 %v294, %v593
      %v595 = vpop.f32.mrb[0].mxu0
      %596 = vmatprep.mubr.f32.mxu0 0.0
      %597 = vmatmul.mubr.f32.gmra.mrb[0].mxu0 %v379
      %v598 = vpop.f32.mrb[0].mxu0
      %v599 = vadd.f32 %v294, %v598
      %v600 = vpop.f32.mrb[0].mxu0
      %601 = vmatprep.mubr.f32.mxu0 0.0
      %602 = vmatmul.mubr.f32.gmra.mrb[0].mxu0 %v382
      %v603 = vpop.f32.mrb[0].mxu0
      %v604 = vadd.f32 %v294, %v603
      %v605 = vpop.f32.mrb[0].mxu0
      %606 = vmatprep.mubr.f32.mxu0 0.0
      %607 = vmatmul.mubr.f32.gmra.mrb[0].mxu0 %v385
      %v608 = vpop.f32.mrb[0].mxu0
      %v609 = vadd.f32 %v294, %v608
      %v610 = vpop.f32.mrb[0].mxu0
      %611 = vmatprep.mubr.f32.mxu0 0.0
      %612 = vmatmul.mubr.f32.gmra.mrb[0].mxu0 %v388
      %v613 = vpop.f32.mrb[0].mxu0
      %v614 = vadd.f32 %v294, %v613
      %v615 = vpop.f32.mrb[0].mxu0
      %616 = vmatprep.mubr.f32.mxu0 0.0
      %617 = vmatmul.mubr.f32.gmra.mrb[0].mxu0 %v391
      %v618 = vpop.f32.mrb[0].mxu0
      %v619 = vadd.f32 %v294, %v618
      %v620 = vpop.f32.mrb[0].mxu0
      %621 = vdwg.mxu0
      %v622 = vmax.f32 %v464, 0.0
      %v623 = vmax.f32 %v469, 0.0
      %v624 = vmax.f32 %v474, 0.0
      %v625 = vmax.f32 %v479, 0.0
      %v626 = vmax.f32 %v484, 0.0
      %v627 = vmax.f32 %v489, 0.0
      %v628 = vmax.f32 %v494, 0.0
      %v629 = vmax.f32 %v499, 0.0
      %v630 = vmax.f32 %v504, 0.0
      %v631 = vmax.f32 %v509, 0.0
      %v632 = vmax.f32 %v514, 0.0
      %v633 = vmax.f32 %v519, 0.0
      %v634 = vmax.f32 %v524, 0.0
      %v635 = vmax.f32 %v529, 0.0
      %v636 = vmax.f32 %v534, 0.0
      %v637 = vmax.f32 %v539, 0.0
      %v638 = vmax.f32 %v544, 0.0
      %v639 = vmax.f32 %v549, 0.0
      %v640 = vmax.f32 %v554, 0.0
      %v641 = vmax.f32 %v559, 0.0
      %v642 = vmax.f32 %v564, 0.0
      %v643 = vmax.f32 %v569, 0.0
      %v644 = vmax.f32 %v574, 0.0
      %v645 = vmax.f32 %v579, 0.0
      %v646 = vmax.f32 %v584, 0.0
      %v647 = vmax.f32 %v589, 0.0
      %v648 = vmax.f32 %v594, 0.0
      %v649 = vmax.f32 %v599, 0.0
      %v650 = vmax.f32 %v604, 0.0
      %v651 = vmax.f32 %v609, 0.0
      %v652 = vmax.f32 %v614, 0.0
      %v653 = vmax.f32 %v619, 0.0
      %v654 = vld [vmem:[%s3] sm:$0xf]
      %v655 = vld [vmem:[%s4] sm:$0x1]
      %v657 = vlaneseq
      %v658 = vshrl.u32 %v657, 7
      %v659 = vsub.s32 0, %v658
      %v660 = vrot.slane %v655, %v659
      %vm662 = vcmask 31744
      %v664 = vsel %vm662, %v622, 0
      %v667 = vsel %vm662, %v623, 0
      %v670 = vsel %vm662, %v624, 0
      %v673 = vsel %vm662, %v625, 0
      %v676 = vsel %vm662, %v626, 0
      %v679 = vsel %vm662, %v627, 0
      %v682 = vsel %vm662, %v628, 0
      %v685 = vsel %vm662, %v629, 0
      %v688 = vsel %vm662, %v630, 0
      %v691 = vsel %vm662, %v631, 0
      %v694 = vsel %vm662, %v632, 0
      %v697 = vsel %vm662, %v633, 0
      %v700 = vsel %vm662, %v634, 0
      %v703 = vsel %vm662, %v635, 0
      %v706 = vsel %vm662, %v636, 0
      %v709 = vsel %vm662, %v637, 0
      %v712 = vsel %vm662, %v638, 0
      %v715 = vsel %vm662, %v639, 0
      %v718 = vsel %vm662, %v640, 0
      %v721 = vsel %vm662, %v641, 0
      %v724 = vsel %vm662, %v642, 0
      %v727 = vsel %vm662, %v643, 0
      %v730 = vsel %vm662, %v644, 0
      %v733 = vsel %vm662, %v645, 0
      %v736 = vsel %vm662, %v646, 0
      %v739 = vsel %vm662, %v647, 0
      %v742 = vsel %vm662, %v648, 0
      %v745 = vsel %vm662, %v649, 0
      %v748 = vsel %vm662, %v650, 0
      %v751 = vsel %vm662, %v651, 0
      %v754 = vsel %vm662, %v652, 0
      %v757 = vsel %vm662, %v653, 0
      %v760 = vsel %vm393, %v654, 0
      %762 = vmatprep.subr.mxu0 0.0
      %763 = vmatpush1.msra.mxu0 %v760
      %764 = vmatprep.subr.mxu0 0.0
      %765 = vmatpush1.msra.mxu0 0.0
      %766 = vmatprep.subr.mxu0 0.0
      %767 = vmatpush1.msra.mxu0 0.0
      %768 = vmatprep.subr.mxu0 0.0
      %769 = vmatpush1.msra.mxu0 0.0
      %770 = vmatprep.subr.mxu0 0.0
      %771 = vmatpush1.msra.mxu0 0.0
      %772 = vmatprep.subr.mxu0 0.0
      %773 = vmatpush1.msra.mxu0 0.0
      %774 = vmatprep.subr.mxu0 0.0
      %775 = vmatpush1.msra.mxu0 0.0
      %776 = vmatprep.subr.mxu0 0.0
      %777 = vmatpush1.msra.mxu0 0.0
      %778 = vmatprep.subr.mxu0 0.0
      %779 = vmatpush1.msra.mxu0 0.0
      %780 = vmatprep.subr.mxu0 0.0
      %781 = vmatpush1.msra.mxu0 0.0
      %782 = vmatprep.subr.mxu0 0.0
      %783 = vmatpush1.msra.mxu0 0.0
      %784 = vmatprep.subr.mxu0 0.0
      %785 = vmatpush1.msra.mxu0 0.0
      %786 = vmatprep.subr.mxu0 0.0
      %787 = vmatpush1.msra.mxu0 0.0
      %788 = vmatprep.subr.mxu0 0.0
      %789 = vmatpush1.msra.mxu0 0.0
      %790 = vmatprep.subr.mxu0 0.0
      %791 = vmatpush1.msra.mxu0 0.0
      %792 = vmatprep.subr.mxu0 0.0
      %793 = vmatpush1.msra.mxu0 0.0
      %794 = vmatprep.subr.mxu0 0.0
      %795 = vmatpush1.msra.mxu0 0.0
      %796 = vmatprep.subr.mxu0 0.0
      %797 = vmatpush1.msra.mxu0 0.0
      %798 = vmatprep.subr.mxu0 0.0
      %799 = vmatpush1.msra.mxu0 0.0
      %800 = vmatprep.subr.mxu0 0.0
      %801 = vmatpush1.msra.mxu0 0.0
      %802 = vmatprep.subr.mxu0 0.0
      %803 = vmatpush1.msra.mxu0 0.0
      %804 = vmatprep.subr.mxu0 0.0
      %805 = vmatpush1.msra.mxu0 0.0
      %806 = vmatprep.subr.mxu0 0.0
      %807 = vmatpush1.msra.mxu0 0.0
      %808 = vmatprep.subr.mxu0 0.0
      %809 = vmatpush1.msra.mxu0 0.0
      %810 = vmatprep.subr.mxu0 0.0
      %811 = vmatpush1.msra.mxu0 0.0
      %812 = vmatprep.subr.mxu0 0.0
      %813 = vmatpush1.msra.mxu0 0.0
      %814 = vmatprep.subr.mxu0 0.0
      %815 = vmatpush1.msra.mxu0 0.0
      %816 = vmatprep.subr.mxu0 0.0
      %817 = vmatpush1.msra.mxu0 0.0
      %818 = vmatprep.subr.mxu0 0.0
      %819 = vmatpush1.msra.mxu0 0.0
      %820 = vmatprep.subr.mxu0 0.0
      %821 = vmatpush1.msra.mxu0 0.0
      %822 = vmatprep.subr.mxu0 0.0
      %823 = vmatpush1.msra.mxu0 0.0
      %824 = vmatprep.subr.mxu0 0.0
      %825 = vmatpush1.msra.mxu0 0.0
      %826 = vmatprep.mubr.f32.mxu0 0.0
      %827 = vmatmul.mubr.f32.gmra.mrb[0].mxu0 %v664
      %v828 = vpop.f32.mrb[0].mxu0
      %v829 = vadd.f32 %v660, %v828
      %v830 = vpop.f32.mrb[0].mxu0
      %831 = vmatprep.mubr.f32.mxu0 0.0
      %832 = vmatmul.mubr.f32.gmra.mrb[0].mxu0 %v667
      %v833 = vpop.f32.mrb[0].mxu0
      %v834 = vadd.f32 %v660, %v833
      %v835 = vpop.f32.mrb[0].mxu0
      %836 = vmatprep.mubr.f32.mxu0 0.0
      %837 = vmatmul.mubr.f32.gmra.mrb[0].mxu0 %v670
      %v838 = vpop.f32.mrb[0].mxu0
      %v839 = vadd.f32 %v660, %v838
      %v840 = vpop.f32.mrb[0].mxu0
      %841 = vmatprep.mubr.f32.mxu0 0.0
      %842 = vmatmul.mubr.f32.gmra.mrb[0].mxu0 %v673
      %v843 = vpop.f32.mrb[0].mxu0
      %v844 = vadd.f32 %v660, %v843
      %v845 = vpop.f32.mrb[0].mxu0
      %846 = vmatprep.mubr.f32.mxu0 0.0
      %847 = vmatmul.mubr.f32.gmra.mrb[0].mxu0 %v676
      %v848 = vpop.f32.mrb[0].mxu0
      %v849 = vadd.f32 %v660, %v848
      %v850 = vpop.f32.mrb[0].mxu0
      %851 = vmatprep.mubr.f32.mxu0 0.0
      %852 = vmatmul.mubr.f32.gmra.mrb[0].mxu0 %v679
      %v853 = vpop.f32.mrb[0].mxu0
      %v854 = vadd.f32 %v660, %v853
      %v855 = vpop.f32.mrb[0].mxu0
      %856 = vmatprep.mubr.f32.mxu0 0.0
      %857 = vmatmul.mubr.f32.gmra.mrb[0].mxu0 %v682
      %v858 = vpop.f32.mrb[0].mxu0
      %v859 = vadd.f32 %v660, %v858
      %v860 = vpop.f32.mrb[0].mxu0
      %861 = vmatprep.mubr.f32.mxu0 0.0
      %862 = vmatmul.mubr.f32.gmra.mrb[0].mxu0 %v685
      %v863 = vpop.f32.mrb[0].mxu0
      %v864 = vadd.f32 %v660, %v863
      %v865 = vpop.f32.mrb[0].mxu0
      %866 = vmatprep.mubr.f32.mxu0 0.0
      %867 = vmatmul.mubr.f32.gmra.mrb[0].mxu0 %v688
      %v868 = vpop.f32.mrb[0].mxu0
      %v869 = vadd.f32 %v660, %v868
      %v870 = vpop.f32.mrb[0].mxu0
      %871 = vmatprep.mubr.f32.mxu0 0.0
      %872 = vmatmul.mubr.f32.gmra.mrb[0].mxu0 %v691
      %v873 = vpop.f32.mrb[0].mxu0
      %v874 = vadd.f32 %v660, %v873
      %v875 = vpop.f32.mrb[0].mxu0
      %876 = vmatprep.mubr.f32.mxu0 0.0
      %877 = vmatmul.mubr.f32.gmra.mrb[0].mxu0 %v694
      %v878 = vpop.f32.mrb[0].mxu0
      %v879 = vadd.f32 %v660, %v878
      %v880 = vpop.f32.mrb[0].mxu0
      %881 = vmatprep.mubr.f32.mxu0 0.0
      %882 = vmatmul.mubr.f32.gmra.mrb[0].mxu0 %v697
      %v883 = vpop.f32.mrb[0].mxu0
      %v884 = vadd.f32 %v660, %v883
      %v885 = vpop.f32.mrb[0].mxu0
      %886 = vmatprep.mubr.f32.mxu0 0.0
      %887 = vmatmul.mubr.f32.gmra.mrb[0].mxu0 %v700
      %v888 = vpop.f32.mrb[0].mxu0
      %v889 = vadd.f32 %v660, %v888
      %v890 = vpop.f32.mrb[0].mxu0
      %891 = vmatprep.mubr.f32.mxu0 0.0
      %892 = vmatmul.mubr.f32.gmra.mrb[0].mxu0 %v703
      %v893 = vpop.f32.mrb[0].mxu0
      %v894 = vadd.f32 %v660, %v893
      %v895 = vpop.f32.mrb[0].mxu0
      %896 = vmatprep.mubr.f32.mxu0 0.0
      %897 = vmatmul.mubr.f32.gmra.mrb[0].mxu0 %v706
      %v898 = vpop.f32.mrb[0].mxu0
      %v899 = vadd.f32 %v660, %v898
      %v900 = vpop.f32.mrb[0].mxu0
      %901 = vmatprep.mubr.f32.mxu0 0.0
      %902 = vmatmul.mubr.f32.gmra.mrb[0].mxu0 %v709
      %v903 = vpop.f32.mrb[0].mxu0
      %v904 = vadd.f32 %v660, %v903
      %v905 = vpop.f32.mrb[0].mxu0
      %906 = vmatprep.mubr.f32.mxu0 0.0
      %907 = vmatmul.mubr.f32.gmra.mrb[0].mxu0 %v712
      %v908 = vpop.f32.mrb[0].mxu0
      %v909 = vadd.f32 %v660, %v908
      %v910 = vpop.f32.mrb[0].mxu0
      %911 = vmatprep.mubr.f32.mxu0 0.0
      %912 = vmatmul.mubr.f32.gmra.mrb[0].mxu0 %v715
      %v913 = vpop.f32.mrb[0].mxu0
      %v914 = vadd.f32 %v660, %v913
      %v915 = vpop.f32.mrb[0].mxu0
      %916 = vmatprep.mubr.f32.mxu0 0.0
      %917 = vmatmul.mubr.f32.gmra.mrb[0].mxu0 %v718
      %v918 = vpop.f32.mrb[0].mxu0
      %v919 = vadd.f32 %v660, %v918
      %v920 = vpop.f32.mrb[0].mxu0
      %921 = vmatprep.mubr.f32.mxu0 0.0
      %922 = vmatmul.mubr.f32.gmra.mrb[0].mxu0 %v721
      %v923 = vpop.f32.mrb[0].mxu0
      %v924 = vadd.f32 %v660, %v923
      %v925 = vpop.f32.mrb[0].mxu0
      %926 = vmatprep.mubr.f32.mxu0 0.0
      %927 = vmatmul.mubr.f32.gmra.mrb[0].mxu0 %v724
      %v928 = vpop.f32.mrb[0].mxu0
      %v929 = vadd.f32 %v660, %v928
      %v930 = vpop.f32.mrb[0].mxu0
      %931 = vmatprep.mubr.f32.mxu0 0.0
      %932 = vmatmul.mubr.f32.gmra.mrb[0].mxu0 %v727
      %v933 = vpop.f32.mrb[0].mxu0
      %v934 = vadd.f32 %v660, %v933
      %v935 = vpop.f32.mrb[0].mxu0
      %936 = vmatprep.mubr.f32.mxu0 0.0
      %937 = vmatmul.mubr.f32.gmra.mrb[0].mxu0 %v730
      %v938 = vpop.f32.mrb[0].mxu0
      %v939 = vadd.f32 %v660, %v938
      %v940 = vpop.f32.mrb[0].mxu0
      %941 = vmatprep.mubr.f32.mxu0 0.0
      %942 = vmatmul.mubr.f32.gmra.mrb[0].mxu0 %v733
      %v943 = vpop.f32.mrb[0].mxu0
      %v944 = vadd.f32 %v660, %v943
      %v945 = vpop.f32.mrb[0].mxu0
      %946 = vmatprep.mubr.f32.mxu0 0.0
      %947 = vmatmul.mubr.f32.gmra.mrb[0].mxu0 %v736
      %v948 = vpop.f32.mrb[0].mxu0
      %v949 = vadd.f32 %v660, %v948
      %v950 = vpop.f32.mrb[0].mxu0
      %951 = vmatprep.mubr.f32.mxu0 0.0
      %952 = vmatmul.mubr.f32.gmra.mrb[0].mxu0 %v739
      %v953 = vpop.f32.mrb[0].mxu0
      %v954 = vadd.f32 %v660, %v953
      %v955 = vpop.f32.mrb[0].mxu0
      %956 = vmatprep.mubr.f32.mxu0 0.0
      %957 = vmatmul.mubr.f32.gmra.mrb[0].mxu0 %v742
      %v958 = vpop.f32.mrb[0].mxu0
      %v959 = vadd.f32 %v660, %v958
      %v960 = vpop.f32.mrb[0].mxu0
      %961 = vmatprep.mubr.f32.mxu0 0.0
      %962 = vmatmul.mubr.f32.gmra.mrb[0].mxu0 %v745
      %v963 = vpop.f32.mrb[0].mxu0
      %v964 = vadd.f32 %v660, %v963
      %v965 = vpop.f32.mrb[0].mxu0
      %966 = vmatprep.mubr.f32.mxu0 0.0
      %967 = vmatmul.mubr.f32.gmra.mrb[0].mxu0 %v748
      %v968 = vpop.f32.mrb[0].mxu0
      %v969 = vadd.f32 %v660, %v968
      %v970 = vpop.f32.mrb[0].mxu0
      %971 = vmatprep.mubr.f32.mxu0 0.0
      %972 = vmatmul.mubr.f32.gmra.mrb[0].mxu0 %v751
      %v973 = vpop.f32.mrb[0].mxu0
      %v974 = vadd.f32 %v660, %v973
      %v975 = vpop.f32.mrb[0].mxu0
      %976 = vmatprep.mubr.f32.mxu0 0.0
      %977 = vmatmul.mubr.f32.gmra.mrb[0].mxu0 %v754
      %v978 = vpop.f32.mrb[0].mxu0
      %v979 = vadd.f32 %v660, %v978
      %v980 = vpop.f32.mrb[0].mxu0
      %981 = vmatprep.mubr.f32.mxu0 0.0
      %982 = vmatmul.mubr.f32.gmra.mrb[0].mxu0 %v757
      %v983 = vpop.f32.mrb[0].mxu0
      %v984 = vadd.f32 %v660, %v983
      %v985 = vpop.f32.mrb[0].mxu0
      %986 = vdwg.mxu0
      %vm987 = vcmp.gt.f32.partialorder %v829, 0.0
      %vm988 = vcmp.gt.f32.partialorder %v834, 0.0
      %vm989 = vcmp.gt.f32.partialorder %v839, 0.0
      %vm990 = vcmp.gt.f32.partialorder %v844, 0.0
      %vm991 = vcmp.gt.f32.partialorder %v849, 0.0
      %vm992 = vcmp.gt.f32.partialorder %v854, 0.0
      %vm993 = vcmp.gt.f32.partialorder %v859, 0.0
      %vm994 = vcmp.gt.f32.partialorder %v864, 0.0
      %vm995 = vcmp.gt.f32.partialorder %v869, 0.0
      %vm996 = vcmp.gt.f32.partialorder %v874, 0.0
      %vm997 = vcmp.gt.f32.partialorder %v879, 0.0
      %vm998 = vcmp.gt.f32.partialorder %v884, 0.0
      %vm999 = vcmp.gt.f32.partialorder %v889, 0.0
      %vm1000 = vcmp.gt.f32.partialorder %v894, 0.0
      %vm1001 = vcmp.gt.f32.partialorder %v899, 0.0
      %vm1002 = vcmp.gt.f32.partialorder %v904, 0.0
      %vm1003 = vcmp.gt.f32.partialorder %v909, 0.0
      %vm1004 = vcmp.gt.f32.partialorder %v914, 0.0
      %vm1005 = vcmp.gt.f32.partialorder %v919, 0.0
      %vm1006 = vcmp.gt.f32.partialorder %v924, 0.0
      %vm1007 = vcmp.gt.f32.partialorder %v929, 0.0
      %vm1008 = vcmp.gt.f32.partialorder %v934, 0.0
      %vm1009 = vcmp.gt.f32.partialorder %v939, 0.0
      %vm1010 = vcmp.gt.f32.partialorder %v944, 0.0
      %vm1011 = vcmp.gt.f32.partialorder %v949, 0.0
      %vm1012 = vcmp.gt.f32.partialorder %v954, 0.0
      %vm1013 = vcmp.gt.f32.partialorder %v959, 0.0
      %vm1014 = vcmp.gt.f32.partialorder %v964, 0.0
      %vm1015 = vcmp.gt.f32.partialorder %v969, 0.0
      %vm1016 = vcmp.gt.f32.partialorder %v974, 0.0
      %vm1017 = vcmp.gt.f32.partialorder %v979, 0.0
      %vm1018 = vcmp.gt.f32.partialorder %v984, 0.0
      %v1019 = vadd.f32 %v829, 1.0
      %v1020 = vadd.f32 %v834, 1.0
      %v1021 = vadd.f32 %v839, 1.0
      %v1022 = vadd.f32 %v844, 1.0
      %v1023 = vadd.f32 %v849, 1.0
      %v1024 = vadd.f32 %v854, 1.0
      %v1025 = vadd.f32 %v859, 1.0
      %v1026 = vadd.f32 %v864, 1.0
      %v1027 = vadd.f32 %v869, 1.0
      %v1028 = vadd.f32 %v874, 1.0
      %v1029 = vadd.f32 %v879, 1.0
      %v1030 = vadd.f32 %v884, 1.0
      %v1031 = vadd.f32 %v889, 1.0
      %v1032 = vadd.f32 %v894, 1.0
      %v1033 = vadd.f32 %v899, 1.0
      %v1034 = vadd.f32 %v904, 1.0
      %v1035 = vadd.f32 %v909, 1.0
      %v1036 = vadd.f32 %v914, 1.0
      %v1037 = vadd.f32 %v919, 1.0
      %v1038 = vadd.f32 %v924, 1.0
      %v1039 = vadd.f32 %v929, 1.0
      %v1040 = vadd.f32 %v934, 1.0
      %v1041 = vadd.f32 %v939, 1.0
      %v1042 = vadd.f32 %v944, 1.0
      %v1043 = vadd.f32 %v949, 1.0
      %v1044 = vadd.f32 %v954, 1.0
      %v1045 = vadd.f32 %v959, 1.0
      %v1046 = vadd.f32 %v964, 1.0
      %v1047 = vadd.f32 %v969, 1.0
      %v1048 = vadd.f32 %v974, 1.0
      %v1049 = vadd.f32 %v979, 1.0
      %v1050 = vadd.f32 %v984, 1.0
      %v1051 = vmin.f32 %v829, 0.0
      %v1052 = vmin.f32 %v834, 0.0
      %v1053 = vmin.f32 %v839, 0.0
      %v1054 = vmin.f32 %v844, 0.0
      %v1055 = vmin.f32 %v849, 0.0
      %v1056 = vmin.f32 %v854, 0.0
      %v1057 = vmin.f32 %v859, 0.0
      %v1058 = vmin.f32 %v864, 0.0
      %v1059 = vmin.f32 %v869, 0.0
      %v1060 = vmin.f32 %v874, 0.0
      %v1061 = vmin.f32 %v879, 0.0
      %v1062 = vmin.f32 %v884, 0.0
      %v1063 = vmin.f32 %v889, 0.0
      %v1064 = vmin.f32 %v894, 0.0
      %v1065 = vmin.f32 %v899, 0.0
      %v1066 = vmin.f32 %v904, 0.0
      %v1067 = vmin.f32 %v909, 0.0
      %v1068 = vmin.f32 %v914, 0.0
      %v1069 = vmin.f32 %v919, 0.0
      %v1070 = vmin.f32 %v924, 0.0
      %v1071 = vmin.f32 %v929, 0.0
      %v1072 = vmin.f32 %v934, 0.0
      %v1073 = vmin.f32 %v939, 0.0
      %v1074 = vmin.f32 %v944, 0.0
      %v1075 = vmin.f32 %v949, 0.0
      %v1076 = vmin.f32 %v954, 0.0
      %v1077 = vmin.f32 %v959, 0.0
      %v1078 = vmin.f32 %v964, 0.0
      %v1079 = vmin.f32 %v969, 0.0
      %v1080 = vmin.f32 %v974, 0.0
      %v1081 = vmin.f32 %v979, 0.0
      %v1082 = vmin.f32 %v984, 0.0
      %v1083 = vmul.f32 %v1051, 1.442695
      %v1084 = vpow.pop %v1083
      %v1085 = vmul.f32 %v1052, 1.442695
      %v1086 = vpow.pop %v1085
      %v1087 = vmul.f32 %v1053, 1.442695
      %v1088 = vpow.pop %v1087
      %v1089 = vmul.f32 %v1054, 1.442695
      %v1090 = vpow.pop %v1089
      %v1091 = vmul.f32 %v1055, 1.442695
      %v1092 = vpow.pop %v1091
      %v1093 = vmul.f32 %v1056, 1.442695
      %v1094 = vpow.pop %v1093
      %v1095 = vmul.f32 %v1057, 1.442695
      %v1096 = vpow.pop %v1095
      %v1097 = vmul.f32 %v1058, 1.442695
      %v1098 = vpow.pop %v1097
      %v1099 = vmul.f32 %v1059, 1.442695
      %v1100 = vpow.pop %v1099
      %v1101 = vmul.f32 %v1060, 1.442695
      %v1102 = vpow.pop %v1101
      %v1103 = vmul.f32 %v1061, 1.442695
      %v1104 = vpow.pop %v1103
      %v1105 = vmul.f32 %v1062, 1.442695
      %v1106 = vpow.pop %v1105
      %v1107 = vmul.f32 %v1063, 1.442695
      %v1108 = vpow.pop %v1107
      %v1109 = vmul.f32 %v1064, 1.442695
      %v1110 = vpow.pop %v1109
      %v1111 = vmul.f32 %v1065, 1.442695
      %v1112 = vpow.pop %v1111
      %v1113 = vmul.f32 %v1066, 1.442695
      %v1114 = vpow.pop %v1113
      %v1115 = vmul.f32 %v1067, 1.442695
      %v1116 = vpow.pop %v1115
      %v1117 = vmul.f32 %v1068, 1.442695
      %v1118 = vpow.pop %v1117
      %v1119 = vmul.f32 %v1069, 1.442695
      %v1120 = vpow.pop %v1119
      %v1121 = vmul.f32 %v1070, 1.442695
      %v1122 = vpow.pop %v1121
      %v1123 = vmul.f32 %v1071, 1.442695
      %v1124 = vpow.pop %v1123
      %v1125 = vmul.f32 %v1072, 1.442695
      %v1126 = vpow.pop %v1125
      %v1127 = vmul.f32 %v1073, 1.442695
      %v1128 = vpow.pop %v1127
      %v1129 = vmul.f32 %v1074, 1.442695
      %v1130 = vpow.pop %v1129
      %v1131 = vmul.f32 %v1075, 1.442695
      %v1132 = vpow.pop %v1131
      %v1133 = vmul.f32 %v1076, 1.442695
      %v1134 = vpow.pop %v1133
      %v1135 = vmul.f32 %v1077, 1.442695
      %v1136 = vpow.pop %v1135
      %v1137 = vmul.f32 %v1078, 1.442695
      %v1138 = vpow.pop %v1137
      %v1139 = vmul.f32 %v1079, 1.442695
      %v1140 = vpow.pop %v1139
      %v1141 = vmul.f32 %v1080, 1.442695
      %v1142 = vpow.pop %v1141
      %v1143 = vmul.f32 %v1081, 1.442695
      %v1144 = vpow.pop %v1143
      %v1145 = vmul.f32 %v1082, 1.442695
      %v1146 = vpow.pop %v1145
      %v1147 = vsel %vm987, %v1019, %v1084
      %v1148 = vsel %vm988, %v1020, %v1086
      %v1149 = vsel %vm989, %v1021, %v1088
      %v1150 = vsel %vm990, %v1022, %v1090
      %v1151 = vsel %vm991, %v1023, %v1092
      %v1152 = vsel %vm992, %v1024, %v1094
      %v1153 = vsel %vm993, %v1025, %v1096
      %v1154 = vsel %vm994, %v1026, %v1098
      %v1155 = vsel %vm995, %v1027, %v1100
      %v1156 = vsel %vm996, %v1028, %v1102
      %v1157 = vsel %vm997, %v1029, %v1104
      %v1158 = vsel %vm998, %v1030, %v1106
      %v1159 = vsel %vm999, %v1031, %v1108
      %v1160 = vsel %vm1000, %v1032, %v1110
      %v1161 = vsel %vm1001, %v1033, %v1112
      %v1162 = vsel %vm1002, %v1034, %v1114
      %v1163 = vsel %vm1003, %v1035, %v1116
      %v1164 = vsel %vm1004, %v1036, %v1118
      %v1165 = vsel %vm1005, %v1037, %v1120
      %v1166 = vsel %vm1006, %v1038, %v1122
      %v1167 = vsel %vm1007, %v1039, %v1124
      %v1168 = vsel %vm1008, %v1040, %v1126
      %v1169 = vsel %vm1009, %v1041, %v1128
      %v1170 = vsel %vm1010, %v1042, %v1130
      %v1171 = vsel %vm1011, %v1043, %v1132
      %v1172 = vsel %vm1012, %v1044, %v1134
      %v1173 = vsel %vm1013, %v1045, %v1136
      %v1174 = vsel %vm1014, %v1046, %v1138
      %v1175 = vsel %vm1015, %v1047, %v1140
      %v1176 = vsel %vm1016, %v1048, %v1142
      %v1177 = vsel %vm1017, %v1049, %v1144
      %v1178 = vsel %vm1018, %v1050, %v1146
      %v1179 = vld [vmem:[%s5] sm:$0xff]
      %v1180 = vld [vmem:[%s5 + $0x8] sm:$0xff]
      %v1181 = vld [vmem:[%s5 + $0x10] sm:$0xff]
      %v1182 = vld [vmem:[%s5 + $0x18] sm:$0xff]
      %v1183 = vld [vmem:[%s5 + $0x20] sm:$0xff]
      %v1184 = vld [vmem:[%s5 + $0x28] sm:$0xff]
      %v1185 = vld [vmem:[%s5 + $0x30] sm:$0xff]
      %v1186 = vld [vmem:[%s5 + $0x38] sm:$0xff]
      %v1187 = vld [vmem:[%s5 + $0x40] sm:$0xff]
      %v1188 = vld [vmem:[%s5 + $0x48] sm:$0xff]
      %v1189 = vld [vmem:[%s5 + $0x50] sm:$0xff]
      %v1190 = vld [vmem:[%s5 + $0x58] sm:$0xff]
      %v1191 = vld [vmem:[%s5 + $0x60] sm:$0xff]
      %v1192 = vld [vmem:[%s5 + $0x68] sm:$0xff]
      %v1193 = vld [vmem:[%s5 + $0x70] sm:$0xff]
      %v1194 = vld [vmem:[%s5 + $0x78] sm:$0xff]
      %v1195 = vld [vmem:[%s5 + $0x80] sm:$0xff]
      %v1196 = vld [vmem:[%s5 + $0x88] sm:$0xff]
      %v1197 = vld [vmem:[%s5 + $0x90] sm:$0xff]
      %v1198 = vld [vmem:[%s5 + $0x98] sm:$0xff]
      %v1199 = vld [vmem:[%s5 + $0xa0] sm:$0xff]
      %v1200 = vld [vmem:[%s5 + $0xa8] sm:$0xff]
      %v1201 = vld [vmem:[%s5 + $0xb0] sm:$0xff]
      %v1202 = vld [vmem:[%s5 + $0xb8] sm:$0xff]
      %v1203 = vld [vmem:[%s5 + $0xc0] sm:$0xff]
      %v1204 = vld [vmem:[%s5 + $0xc8] sm:$0xff]
      %v1205 = vld [vmem:[%s5 + $0xd0] sm:$0xff]
      %v1206 = vld [vmem:[%s5 + $0xd8] sm:$0xff]
      %v1207 = vld [vmem:[%s5 + $0xe0] sm:$0xff]
      %v1208 = vld [vmem:[%s5 + $0xe8] sm:$0xff]
      %v1209 = vld [vmem:[%s5 + $0xf0] sm:$0xff]
      %v1210 = vld [vmem:[%s5 + $0xf8] sm:$0xff]
      %1212 = vset.pattern.permute.xlu0 0
      %1213 = vperm.xlu0 %1212, %v1179
      %v1214 = vpop.permute.xlu0 %1213
      %1217 = vset.pattern.permute.xlu0 0
      %1218 = vperm.xlu0 %1217, %v1180
      %v1219 = vpop.permute.xlu0 %1218
      %1222 = vset.pattern.permute.xlu0 0
      %1223 = vperm.xlu0 %1222, %v1181
      %v1224 = vpop.permute.xlu0 %1223
      %1227 = vset.pattern.permute.xlu0 0
      %1228 = vperm.xlu0 %1227, %v1182
      %v1229 = vpop.permute.xlu0 %1228
      %1232 = vset.pattern.permute.xlu0 0
      %1233 = vperm.xlu0 %1232, %v1183
      %v1234 = vpop.permute.xlu0 %1233
      %1237 = vset.pattern.permute.xlu0 0
      %1238 = vperm.xlu0 %1237, %v1184
      %v1239 = vpop.permute.xlu0 %1238
      %1242 = vset.pattern.permute.xlu0 0
      %1243 = vperm.xlu0 %1242, %v1185
      %v1244 = vpop.permute.xlu0 %1243
      %1247 = vset.pattern.permute.xlu0 0
      %1248 = vperm.xlu0 %1247, %v1186
      %v1249 = vpop.permute.xlu0 %1248
      %1252 = vset.pattern.permute.xlu0 0
      %1253 = vperm.xlu0 %1252, %v1187
      %v1254 = vpop.permute.xlu0 %1253
      %1257 = vset.pattern.permute.xlu0 0
      %1258 = vperm.xlu0 %1257, %v1188
      %v1259 = vpop.permute.xlu0 %1258
      %1262 = vset.pattern.permute.xlu0 0
      %1263 = vperm.xlu0 %1262, %v1189
      %v1264 = vpop.permute.xlu0 %1263
      %1267 = vset.pattern.permute.xlu0 0
      %1268 = vperm.xlu0 %1267, %v1190
      %v1269 = vpop.permute.xlu0 %1268
      %1272 = vset.pattern.permute.xlu0 0
      %1273 = vperm.xlu0 %1272, %v1191
      %v1274 = vpop.permute.xlu0 %1273
      %1277 = vset.pattern.permute.xlu0 0
      %1278 = vperm.xlu0 %1277, %v1192
      %v1279 = vpop.permute.xlu0 %1278
      %1282 = vset.pattern.permute.xlu0 0
      %1283 = vperm.xlu0 %1282, %v1193
      %v1284 = vpop.permute.xlu0 %1283
      %1287 = vset.pattern.permute.xlu0 0
      %1288 = vperm.xlu0 %1287, %v1194
      %v1289 = vpop.permute.xlu0 %1288
      %1292 = vset.pattern.permute.xlu0 0
      %1293 = vperm.xlu0 %1292, %v1195
      %v1294 = vpop.permute.xlu0 %1293
      %1297 = vset.pattern.permute.xlu0 0
      %1298 = vperm.xlu0 %1297, %v1196
      %v1299 = vpop.permute.xlu0 %1298
      %1302 = vset.pattern.permute.xlu0 0
      %1303 = vperm.xlu0 %1302, %v1197
      %v1304 = vpop.permute.xlu0 %1303
      %1307 = vset.pattern.permute.xlu0 0
      %1308 = vperm.xlu0 %1307, %v1198
      %v1309 = vpop.permute.xlu0 %1308
      %1312 = vset.pattern.permute.xlu0 0
      %1313 = vperm.xlu0 %1312, %v1199
      %v1314 = vpop.permute.xlu0 %1313
      %1317 = vset.pattern.permute.xlu0 0
      %1318 = vperm.xlu0 %1317, %v1200
      %v1319 = vpop.permute.xlu0 %1318
      %1322 = vset.pattern.permute.xlu0 0
      %1323 = vperm.xlu0 %1322, %v1201
      %v1324 = vpop.permute.xlu0 %1323
      %1327 = vset.pattern.permute.xlu0 0
      %1328 = vperm.xlu0 %1327, %v1202
      %v1329 = vpop.permute.xlu0 %1328
      %1332 = vset.pattern.permute.xlu0 0
      %1333 = vperm.xlu0 %1332, %v1203
      %v1334 = vpop.permute.xlu0 %1333
      %1337 = vset.pattern.permute.xlu0 0
      %1338 = vperm.xlu0 %1337, %v1204
      %v1339 = vpop.permute.xlu0 %1338
      %1342 = vset.pattern.permute.xlu0 0
      %1343 = vperm.xlu0 %1342, %v1205
      %v1344 = vpop.permute.xlu0 %1343
      %1347 = vset.pattern.permute.xlu0 0
      %1348 = vperm.xlu0 %1347, %v1206
      %v1349 = vpop.permute.xlu0 %1348
      %1352 = vset.pattern.permute.xlu0 0
      %1353 = vperm.xlu0 %1352, %v1207
      %v1354 = vpop.permute.xlu0 %1353
      %1357 = vset.pattern.permute.xlu0 0
      %1358 = vperm.xlu0 %1357, %v1208
      %v1359 = vpop.permute.xlu0 %1358
      %1362 = vset.pattern.permute.xlu0 0
      %1363 = vperm.xlu0 %1362, %v1209
      %v1364 = vpop.permute.xlu0 %1363
      %1367 = vset.pattern.permute.xlu0 0
      %1368 = vperm.xlu0 %1367, %v1210
      %v1369 = vpop.permute.xlu0 %1368
      %v1371 = vmul.f32 %v1147, %v1214
      %v1372 = vmul.f32 %v1148, %v1219
      %v1373 = vmul.f32 %v1149, %v1224
      %v1374 = vmul.f32 %v1150, %v1229
      %v1375 = vmul.f32 %v1151, %v1234
      %v1376 = vmul.f32 %v1152, %v1239
      %v1377 = vmul.f32 %v1153, %v1244
      %v1378 = vmul.f32 %v1154, %v1249
      %v1379 = vmul.f32 %v1155, %v1254
      %v1380 = vmul.f32 %v1156, %v1259
      %v1381 = vmul.f32 %v1157, %v1264
      %v1382 = vmul.f32 %v1158, %v1269
      %v1383 = vmul.f32 %v1159, %v1274
      %v1384 = vmul.f32 %v1160, %v1279
      %v1385 = vmul.f32 %v1161, %v1284
      %v1386 = vmul.f32 %v1162, %v1289
      %v1387 = vmul.f32 %v1163, %v1294
      %v1388 = vmul.f32 %v1164, %v1299
      %v1389 = vmul.f32 %v1165, %v1304
      %v1390 = vmul.f32 %v1166, %v1309
      %v1391 = vmul.f32 %v1167, %v1314
      %v1392 = vmul.f32 %v1168, %v1319
      %v1393 = vmul.f32 %v1169, %v1324
      %v1394 = vmul.f32 %v1170, %v1329
      %v1395 = vmul.f32 %v1171, %v1334
      %v1396 = vmul.f32 %v1172, %v1339
      %v1397 = vmul.f32 %v1173, %v1344
      %v1398 = vmul.f32 %v1174, %v1349
      %v1399 = vmul.f32 %v1175, %v1354
      %v1400 = vmul.f32 %v1176, %v1359
      %v1401 = vmul.f32 %v1177, %v1364
      %v1402 = vmul.f32 %v1178, %v1369
      %vm1403 = vcmask 64512
      %1404 = vst.msk [vmem:[%s251] sm:$0xff] %vm1403, %v1371
      %1405 = vst.msk [vmem:[%s251 + $0x8] sm:$0xff] %vm1403, %v1372
      %1406 = vst.msk [vmem:[%s251 + $0x10] sm:$0xff] %vm1403, %v1373
      %1407 = vst.msk [vmem:[%s251 + $0x18] sm:$0xff] %vm1403, %v1374
      %1408 = vst.msk [vmem:[%s251 + $0x20] sm:$0xff] %vm1403, %v1375
      %1409 = vst.msk [vmem:[%s251 + $0x28] sm:$0xff] %vm1403, %v1376
      %1410 = vst.msk [vmem:[%s251 + $0x30] sm:$0xff] %vm1403, %v1377
      %1411 = vst.msk [vmem:[%s251 + $0x38] sm:$0xff] %vm1403, %v1378
      %1412 = vst.msk [vmem:[%s251 + $0x40] sm:$0xff] %vm1403, %v1379
      %1413 = vst.msk [vmem:[%s251 + $0x48] sm:$0xff] %vm1403, %v1380
      %1414 = vst.msk [vmem:[%s251 + $0x50] sm:$0xff] %vm1403, %v1381
      %1415 = vst.msk [vmem:[%s251 + $0x58] sm:$0xff] %vm1403, %v1382
      %1416 = vst.msk [vmem:[%s251 + $0x60] sm:$0xff] %vm1403, %v1383
      %1417 = vst.msk [vmem:[%s251 + $0x68] sm:$0xff] %vm1403, %v1384
      %1418 = vst.msk [vmem:[%s251 + $0x70] sm:$0xff] %vm1403, %v1385
      %1419 = vst.msk [vmem:[%s251 + $0x78] sm:$0xff] %vm1403, %v1386
      %1420 = vst.msk [vmem:[%s251 + $0x80] sm:$0xff] %vm1403, %v1387
      %1421 = vst.msk [vmem:[%s251 + $0x88] sm:$0xff] %vm1403, %v1388
      %1422 = vst.msk [vmem:[%s251 + $0x90] sm:$0xff] %vm1403, %v1389
      %1423 = vst.msk [vmem:[%s251 + $0x98] sm:$0xff] %vm1403, %v1390
      %1424 = vst.msk [vmem:[%s251 + $0xa0] sm:$0xff] %vm1403, %v1391
      %1425 = vst.msk [vmem:[%s251 + $0xa8] sm:$0xff] %vm1403, %v1392
      %1426 = vst.msk [vmem:[%s251 + $0xb0] sm:$0xff] %vm1403, %v1393
      %1427 = vst.msk [vmem:[%s251 + $0xb8] sm:$0xff] %vm1403, %v1394
      %1428 = vst.msk [vmem:[%s251 + $0xc0] sm:$0xff] %vm1403, %v1395
      %1429 = vst.msk [vmem:[%s251 + $0xc8] sm:$0xff] %vm1403, %v1396
      %1430 = vst.msk [vmem:[%s251 + $0xd0] sm:$0xff] %vm1403, %v1397
      %1431 = vst.msk [vmem:[%s251 + $0xd8] sm:$0xff] %vm1403, %v1398
      %1432 = vst.msk [vmem:[%s251 + $0xe0] sm:$0xff] %vm1403, %v1399
      %1433 = vst.msk [vmem:[%s251 + $0xe8] sm:$0xff] %vm1403, %v1400
      %1434 = vst.msk [vmem:[%s251 + $0xf0] sm:$0xff] %vm1403, %v1401
      %1435 = vst.msk [vmem:[%s251 + $0xf8] sm:$0xff] %vm1403, %v1402
      %p1436 = scmp.lt.s32.totalorder %s17, 1
      %s1437 = scalar_select %p1436, %s17, 1
      %s1438 = smul.addr %s1437, 32
      %s1439 = smul.addr %s1438, 8
      %s1440 = scalar_lea.vmem %s6, %s1439
      // Predicated region
      $region45: #{tpu_custom_call.1} parent=43 // pred_check
        %p1441 = pneg %p166
      $region46: #{tpu_custom_call.1} parent=43 // pred_check_branch
        %1443 = sbr.rel (%p1441) target = $region48
      $region47: #{tpu_custom_call.1} parent=43 // pred_region
        _
      $region48: #{tpu_custom_call.1} parent=43 // pred_fallthru
        _
    $region44: #{tpu_custom_call.1} parent=5 // pred_fallthru
      _
    %p1444 = scmp.le.s32.totalorder 2, %s12
    // Predicated region
    $region49: #{tpu_custom_call.1} parent=5 // pred_check
      %p1445 = pneg %p1444
    $region50: #{tpu_custom_call.1} parent=5 // pred_check_branch
      %1447 = sbr.rel (%p1445) target = $region52
    $region51: #{tpu_custom_call.1} parent=5 // pred_region
      %s1448 = ssub.s32 %s12, 2
      // Predicated region
      $region53: #{tpu_custom_call.1} parent=51 // pred_check
        %p1449 = pneg %p172
      $region54: #{tpu_custom_call.1} parent=51 // pred_check_branch
        %1451 = sbr.rel (%p1449) target = $region56
      $region55: #{tpu_custom_call.1} parent=51 // pred_region
        %p1452 = scmp.lt.s32.totalorder %s18, 1
        %s1453 = scalar_select %p1452, %s18, 1
        %s1454 = smul.addr %s1453, 32
        %s1455 = smul.addr %s1454, 8
        %s1456 = scalar_lea.vmem %s6, %s1455
      $region56: #{tpu_custom_call.1} parent=51 // pred_fallthru
        _
    $region52: #{tpu_custom_call.1} parent=5 // pred_fallthru
      _
  $region6: #{tpu_custom_call.1} parent=0 // loop_footer
    %s16 = sadd.s32 1, %s12
  $region7: #{tpu_custom_call.1} parent=0 // loop_footer_branch
    %11 = sbr.rel target = $region3
  $region8: #{tpu_custom_call.1} parent=0 // loop_exit
    _

</llo_original>
